<compile_context>
chip_gen: v6e
topology: v6e:2x2x1
jax: 0.10.0
libtpu: 0.0.40
codegen_flags: <defaults>
</compile_context>

<pallas_src>
import functools

import jax
import jax.numpy as jnp
from jax.experimental import pallas as pl
from jax.experimental.pallas import tpu as pltpu


def _round_up(x: int, m: int) -> int:
    return ((x + m - 1) // m) * m


def _ffn_kernel(x_ref, w1_ref, b1_ref, w2_ref, b2_ref, o_ref, acc_ref):
    # x_ref  : (tm, hidden)     activation row block (invariant across k)
    # w1_ref : (hidden, tf)     W1 column tile
    # b1_ref : (1, ffn_pad)     full-width, VMEM-resident
    # w2_ref : (tf, out)        W2 row tile (full output width)
    # b2_ref : (1, out)         full-width, VMEM-resident
    # o_ref  : (tm, out)        output row block (same block across the k axis)
    # acc_ref: (tm, out) f32    VMEM accumulator scratch
    k = pl.program_id(1)

    @pl.when(k == 0)
    def _():
        acc_ref[...] = jnp.zeros_like(acc_ref)

    tf = w1_ref.shape[1]
    if b1_ref.shape[1] == tf:        # ffn not tiled: whole bias
        b1_tile = b1_ref[...]
    else:                            # tf is a multiple of 128 here -> aligned slice
        start = pl.multiple_of(k * tf, 128)
        b1_tile = b1_ref[:, pl.ds(start, tf)]

    # layer 1 partial: x @ W1[:, k-tile] (MXU, f32 accumulate), bias + ReLU (VPU)
    h = jnp.dot(x_ref[...], w1_ref[...], preferred_element_type=jnp.float32)
    h = jnp.maximum(h + b1_tile, 0.0)

    # dropout: identity (eval-mode semantics)
    # TODO(synk): training-mode dropout (PRNG mask + 1/(1-p)) not emitted.

    # layer 2 partial accumulation into the resident f32 accumulator.
    # Cast h to the weight dtype so bf16/fp8 weights use the fast MXU path.
    acc_ref[...] += jnp.dot(h.astype(w2_ref.dtype), w2_ref[...],
                            preferred_element_type=jnp.float32)

    @pl.when(k == pl.num_programs(1) - 1)
    def _():
        o_ref[...] = (acc_ref[...] + b2_ref[...]).astype(o_ref.dtype)


def _pick_tiles(m, hidden, ffn, out, x_sz, w_sz, o_sz,
                tile_m, tile_ffn, vmem_limit_bytes):
    """Choose (tile_m, tile_ffn) so double-buffered blocks fit the VMEM budget."""
    tm = min(tile_m, _round_up(m, 8))
    # Megacore (v7x): make sure there are >= 2 row blocks whenever M allows, so the
    # "parallel" M axis gives both TensorCores work.
    if m > 8 and -(-m // tm) == 1:
        tm = min(tm, _round_up(-(-m // 2), 8))

    tf_tileable = ffn > tile_ffn
    tf = tile_ffn if tf_tileable else ffn   # untiled ffn needs no weight padding

    def est(tm_, tf_):
        ffn_p = _round_up(ffn, tf_) if tf_tileable else ffn
        blocks = 2 * (tm_ * hidden * x_sz       # x (double-buffered)
                      + hidden * tf_ * w_sz     # W1 tile
                      + tf_ * out * w_sz        # W2 tile
                      + tm_ * out * o_sz        # output block
                      + ffn_p * 4 + out * 4)    # resident biases (upper bound)
        scratch = tm_ * out * 4 + tm_ * tf_ * 4  # f32 accumulator + h temporary
        return blocks + scratch

    budget = int(0.70 * vmem_limit_bytes)
    while est(tm, tf) > budget:
        if tf_tileable and tf > 256:
            tf = max(128, (tf // 2) // 128 * 128)
        elif tm > 64:
            tm = max(64, _round_up(tm // 2, 8))
        elif tf_tileable and tf > 128:
            tf = 128
        else:
            break
    return tm, tf


@functools.partial(jax.jit,
                   static_argnames=("tile_m", "tile_ffn", "vmem_limit_mb"))
def feed_forward_network(x, w1, b1, w2, b2, *,
                         tile_m=256, tile_ffn=512, vmem_limit_mb=48):
    """x: (..., hidden) -> (..., out). Fused two-layer MLP Pallas kernel."""
    orig_shape = x.shape
    hidden = orig_shape[-1]
    ffn = w1.shape[1]
    out = w2.shape[1]

    assert tile_ffn % 128 == 0, "tile_ffn must be a multiple of 128"

    x2d = x.reshape(-1, hidden)
    m = x2d.shape[0]

    vmem_limit_bytes = vmem_limit_mb * 1024 * 1024
    tm, tf = _pick_tiles(m, hidden, ffn, out,
                         x2d.dtype.itemsize, w1.dtype.itemsize, x.dtype.itemsize,
                         tile_m, tile_ffn, vmem_limit_bytes)

    # Only the FFN reduction dim ever needs zero padding (exact for this math).
    ffn_pad = ffn if tf == ffn else _round_up(ffn, tf)
    if ffn_pad != ffn:
        w1p = jnp.pad(w1, ((0, 0), (0, ffn_pad - ffn)))
        b1p = jnp.pad(b1, (0, ffn_pad - ffn))
        w2p = jnp.pad(w2, ((0, ffn_pad - ffn), (0, 0)))
    else:
        w1p, b1p, w2p = w1, b1, w2

    b1_2d = b1p.reshape(1, ffn_pad)
    b2_2d = b2.reshape(1, out)

    gm = pl.cdiv(m, tm)
    gk = ffn_pad // tf
    grid = (gm, gk)

    rows = gm * tm  # rows actually pushed through the MXU (incl. masked tail rows)
    flops = 2 * rows * (hidden * ffn_pad + ffn_pad * out)
    bytes_accessed = (
        rows * hidden * x2d.dtype.itemsize                 # x, read once per row block
        + gm * hidden * ffn_pad * w1p.dtype.itemsize       # W1, streamed once per row block
        + gm * ffn_pad * out * w2p.dtype.itemsize          # W2, streamed once per row block
        + ffn_pad * b1_2d.dtype.itemsize + out * b2_2d.dtype.itemsize
        + rows * out * x.dtype.itemsize                    # output, written once
    )

    y2d = pl.pallas_call(
        _ffn_kernel,
        out_shape=jax.ShapeDtypeStruct((m, out), x.dtype),
        grid_spec=pltpu.PrefetchScalarGridSpec(
            num_scalar_prefetch=0,
            grid=grid,
            in_specs=[
                pl.BlockSpec((tm, hidden), lambda i, k: (i, 0)),   # x row block
                pl.BlockSpec((hidden, tf), lambda i, k: (0, k)),   # W1 column tile
                pl.BlockSpec((1, ffn_pad), lambda i, k: (0, 0)),   # b1 (resident)
                pl.BlockSpec((tf, out), lambda i, k: (k, 0)),      # W2 row tile
                pl.BlockSpec((1, out), lambda i, k: (0, 0)),       # b2 (resident)
            ],
            out_specs=pl.BlockSpec((tm, out), lambda i, k: (i, 0)),
            scratch_shapes=[pltpu.VMEM((tm, out), jnp.float32)],
        ),
        compiler_params=pltpu.CompilerParams(
            dimension_semantics=("parallel", "arbitrary"),
            vmem_limit_bytes=vmem_limit_bytes,
        ),
        cost_estimate=pl.CostEstimate(
            flops=flops, transcendentals=0, bytes_accessed=bytes_accessed),
    )(x2d, w1p, b1_2d, w2p, b2_2d)

    return y2d.reshape(*orig_shape[:-1], out)


def init_params(key, hidden_size, ffn_size, out_size, dtype=jnp.float32):
    """Deterministic init matching nn.Linear shapes (stored transposed)."""
    k1, k2, k3, k4 = jax.random.split(key, 4)
    lim1 = 1.0 / (hidden_size ** 0.5)
    lim2 = 1.0 / (ffn_size ** 0.5)
    # PyTorch nn.Linear weight is (out, in); we store (in, out).
    w1 = jax.random.uniform(k1, (hidden_size, ffn_size), dtype, -lim1, lim1)
    b1 = jax.random.uniform(k2, (ffn_size,), dtype, -lim1, lim1)
    w2 = jax.random.uniform(k3, (ffn_size, out_size), dtype, -lim2, lim2)
    b2 = jax.random.uniform(k4, (out_size,), dtype, -lim2, lim2)
    return w1, b1, w2, b2


if __name__ == "__main__":
    key = jax.random.PRNGKey(0)

    batch, seq = 2, 8
    hidden_size, ffn_size, out_size = 32, 64, 32
    dropout_rate = 0.1  # identity in eval mode

    kx, kp = jax.random.split(key)
    x = jax.random.normal(kx, (batch, seq, hidden_size), jnp.float32)
    w1, b1, w2, b2 = init_params(kp, hidden_size, ffn_size, out_size)

    y = jax.block_until_ready(feed_forward_network(x, w1, b1, w2, b2))

    # Reference (same semantics as the PyTorch forward in eval mode).
    ref = jnp.maximum(x @ w1 + b1, 0.0) @ w2 + b2
    assert y.shape == (batch, seq, out_size)
    assert jnp.allclose(y, ref, atol=1e-5, rtol=1e-5), "mismatch vs reference"

    # Ragged-M path (M not a multiple of the row tile; handled by masked stores,
    # no activation padding).
    x_r = jax.random.normal(kx, (3, 7, hidden_size), jnp.float32)
    y_r = jax.block_until_ready(feed_forward_network(x_r, w1, b1, w2, b2))
    ref_r = jnp.maximum(x_r @ w1 + b1, 0.0) @ w2 + b2
    assert y_r.shape == (3, 7, out_size)
    assert jnp.allclose(y_r, ref_r, atol=1e-5, rtol=1e-5), "ragged mismatch"

    print("KERNEL_OK")
</pallas_src>

<mosaic_0001>
module attributes {stable_mosaic.version = 11 : i64} {
  func.func @_ffn_kernel(%arg0: i32, %arg1: i32, %arg2: memref<8x32xf32, #tpu.memory_space<vmem>>, %arg3: memref<32x64xf32, #tpu.memory_space<vmem>>, %arg4: memref<1x64xf32, #tpu.memory_space<vmem>>, %arg5: memref<64x32xf32, #tpu.memory_space<vmem>>, %arg6: memref<1x32xf32, #tpu.memory_space<vmem>>, %arg7: memref<8x32xf32, #tpu.memory_space<vmem>>, %arg8: memref<8x32xf32, #tpu.memory_space<vmem>>) attributes {dimension_semantics = [#tpu.dimension_semantics<parallel>, #tpu.dimension_semantics<arbitrary>], iteration_bounds = array<i64: 2, 1>, scalar_prefetch = 0 : i64, scratch_operands = 1 : i64, tpu.core_type = #tpu.core_type<tc>, window_params = [{transform_indices = @transform_0, window_bounds = array<i64: 8, 32>}, {transform_indices = @transform_1, window_bounds = array<i64: 32, 64>}, {pipeline_mode = #tpu.pipeline_mode<synchronous>, transform_indices = @transform_2, window_bounds = array<i64: 1, 64>}, {transform_indices = @transform_3, window_bounds = array<i64: 64, 32>}, {pipeline_mode = #tpu.pipeline_mode<synchronous>, transform_indices = @transform_4, window_bounds = array<i64: 1, 32>}, {transform_indices = @transform_5, window_bounds = array<i64: 8, 32>}]} {
    %c0_i32 = arith.constant 0 : i32
    %0 = arith.cmpi eq, %arg1, %c0_i32 : i32
    %1 = arith.extui %0 : i1 to i32
    %c0_i32_0 = arith.constant 0 : i32
    %2 = arith.cmpi ne, %1, %c0_i32_0 : i32
    scf.if %2 {
      %cst_16 = arith.constant 0.000000e+00 : f32
      %19 = vector.broadcast %cst_16 : f32 to vector<8x32xf32>
      %c0_17 = arith.constant 0 : index
      %c0_18 = arith.constant 0 : index
      %20 = vector.load %arg8[%c0_17, %c0_18] : memref<8x32xf32, #tpu.memory_space<vmem>>, vector<8x32xf32>
      tpu.vector_store %arg8[%c0_17, %c0_18], %19 {strides = array<i32>} : memref<8x32xf32, #tpu.memory_space<vmem>>, vector<8x32xf32>,
    } else {
    }
    %c0 = arith.constant 0 : index
    %c0_1 = arith.constant 0 : index
    %3 = vector.load %arg4[%c0, %c0_1] : memref<1x64xf32, #tpu.memory_space<vmem>>, vector<1x64xf32>
    %c0_2 = arith.constant 0 : index
    %c0_3 = arith.constant 0 : index
    %4 = vector.load %arg2[%c0_2, %c0_3] : memref<8x32xf32, #tpu.memory_space<vmem>>, vector<8x32xf32>
    %c0_4 = arith.constant 0 : index
    %c0_5 = arith.constant 0 : index
    %5 = vector.load %arg3[%c0_4, %c0_5] : memref<32x64xf32, #tpu.memory_space<vmem>>, vector<32x64xf32>
    %cst = arith.constant dense<0.000000e+00> : vector<8x64xf32>
    %6 = tpu.matmul %4, %5, %cst {dimension_numbers = #tpu.dot_dimension_numbers<[1], [0], [0], [1], [0, 0, 1, 1], [], []>} : vector<8x32xf32>, vector<32x64xf32>, vector<8x64xf32> -> vector<8x64xf32>
    %7 = vector.broadcast %3 : vector<1x64xf32> to vector<8x64xf32>
    %8 = arith.addf %6, %7 : vector<8x64xf32>
    %cst_6 = arith.constant 0.000000e+00 : f32
    %9 = vector.broadcast %cst_6 : f32 to vector<8x64xf32>
    %10 = arith.maximumf %8, %9 : vector<8x64xf32>
    %c0_7 = arith.constant 0 : index
    %c0_8 = arith.constant 0 : index
    %11 = vector.load %arg8[%c0_7, %c0_8] : memref<8x32xf32, #tpu.memory_space<vmem>>, vector<8x32xf32>
    %c0_9 = arith.constant 0 : index
    %c0_10 = arith.constant 0 : index
    %12 = vector.load %arg5[%c0_9, %c0_10] : memref<64x32xf32, #tpu.memory_space<vmem>>, vector<64x32xf32>
    %cst_11 = arith.constant dense<0.000000e+00> : vector<8x32xf32>
    %13 = tpu.matmul %10, %12, %cst_11 {dimension_numbers = #tpu.dot_dimension_numbers<[1], [0], [0], [1], [0, 0, 1, 1], [], []>} : vector<8x64xf32>, vector<64x32xf32>, vector<8x32xf32> -> vector<8x32xf32>
    %14 = arith.addf %11, %13 : vector<8x32xf32>
    %c0_12 = arith.constant 0 : index
    %c0_13 = arith.constant 0 : index
    %15 = vector.load %arg8[%c0_12, %c0_13] : memref<8x32xf32, #tpu.memory_space<vmem>>, vector<8x32xf32>
    tpu.vector_store %arg8[%c0_12, %c0_13], %14 {strides = array<i32>} : memref<8x32xf32, #tpu.memory_space<vmem>>, vector<8x32xf32>,
    %c0_i32_14 = arith.constant 0 : i32
    %16 = arith.cmpi eq, %arg1, %c0_i32_14 : i32
    %17 = arith.extui %16 : i1 to i32
    %c0_i32_15 = arith.constant 0 : i32
    %18 = arith.cmpi ne, %17, %c0_i32_15 : i32
    scf.if %18 {
      %c0_16 = arith.constant 0 : index
      %c0_17 = arith.constant 0 : index
      %19 = vector.load %arg8[%c0_16, %c0_17] : memref<8x32xf32, #tpu.memory_space<vmem>>, vector<8x32xf32>
      %c0_18 = arith.constant 0 : index
      %c0_19 = arith.constant 0 : index
      %20 = vector.load %arg6[%c0_18, %c0_19] : memref<1x32xf32, #tpu.memory_space<vmem>>, vector<1x32xf32>
      %21 = vector.broadcast %20 : vector<1x32xf32> to vector<8x32xf32>
      %22 = arith.addf %19, %21 : vector<8x32xf32>
      %c0_20 = arith.constant 0 : index
      %c0_21 = arith.constant 0 : index
      %23 = vector.load %arg7[%c0_20, %c0_21] : memref<8x32xf32, #tpu.memory_space<vmem>>, vector<8x32xf32>
      tpu.vector_store %arg7[%c0_20, %c0_21], %22 {strides = array<i32>} : memref<8x32xf32, #tpu.memory_space<vmem>>, vector<8x32xf32>,
    } else {
    }
    return
  }
  func.func @transform_0(%arg0: i32, %arg1: i32) -> (i32, i32) {
    %c0_i32 = arith.constant 0 : i32
    %c0_i32_0 = arith.constant 0 : i32
    return %arg0, %c0_i32 : i32, i32
  }
  func.func @transform_1(%arg0: i32, %arg1: i32) -> (i32, i32) {
    %c0_i32 = arith.constant 0 : i32
    %c0_i32_0 = arith.constant 0 : i32
    return %c0_i32, %arg1 : i32, i32
  }
  func.func @transform_2(%arg0: i32, %arg1: i32) -> (i32, i32) {
    %c0_i32 = arith.constant 0 : i32
    %c0_i32_0 = arith.constant 0 : i32
    %c0_i32_1 = arith.constant 0 : i32
    return %c0_i32, %c0_i32_0 : i32, i32
  }
  func.func @transform_3(%arg0: i32, %arg1: i32) -> (i32, i32) {
    %c0_i32 = arith.constant 0 : i32
    %c0_i32_0 = arith.constant 0 : i32
    return %arg1, %c0_i32 : i32, i32
  }
  func.func @transform_4(%arg0: i32, %arg1: i32) -> (i32, i32) {
    %c0_i32 = arith.constant 0 : i32
    %c0_i32_0 = arith.constant 0 : i32
    %c0_i32_1 = arith.constant 0 : i32
    return %c0_i32, %c0_i32_0 : i32, i32
  }
  func.func @transform_5(%arg0: i32, %arg1: i32) -> (i32, i32) {
    %c0_i32 = arith.constant 0 : i32
    %c0_i32_0 = arith.constant 0 : i32
    return %arg0, %c0_i32 : i32, i32
  }
}

</mosaic_0001>

<llo_original>
// kernel: feed_forward_network.1
$region0: #{feed_forward_network.1}
  #allocation0 [shape = 'u32[]', space=smem, size = 0x4, offset = 0x4, fixed_abs, tag = 'smem constant byte address 0x4 - core index']
  #allocation1 [shape = 'u32[144,128]{1,0:T(1,128)}', space=vmem, size = 0x12000, scoped, tag = 'internal scratch']
  #allocation2 [shape = 'f32[8,32]{1,0:T(8,128)}', space=vmem, size = 0x1000, scoped, tag = 'scratch operand']
  %s0 = inlined_call_operand.vmem [shape: f32[16,32], index: 0, kind: input, shape index: {}]
  %s1 = inlined_call_operand.vmem [shape: f32[32,64], index: 1, kind: input, shape index: {}]
  %s2 = inlined_call_operand.vmem [shape: f32[1,64], index: 2, kind: input, shape index: {}]
  %s3 = inlined_call_operand.vmem [shape: f32[64,32], index: 3, kind: input, shape index: {}]
  %s4 = inlined_call_operand.vmem [shape: f32[1,32], index: 4, kind: input, shape index: {}]
  %s5 = inlined_call_operand.hbm [shape: f32[16,32], index: 5, kind: output, shape index: {}]
  %s6 = sld [smem:[#allocation0]]
  $region61: #{feed_forward_network.1} parent=0
    _
  %s8 = ssub.s32 1, %s6
  %s9 = scalar_select 0, %s8, %s6
  $region1: #{feed_forward_network.1} parent=0
    #allocation3 [shape = 'u8[8192]{0}', space=vmem, size = 0x2000, scoped, tag = 'output window, operand 0']
    #allocation4 [shape = 's32[2]{0}', space=sflag, size = 0x8, scoped, tag = 'scoped memory for feed_forward_network.1']
    %10 = vsyncpa [#allocation4], 0
    %s11 = scalar_lea.sflag [#allocation4], 1
    %12 = vsyncpa %s11, 0
    loop: start=0, step=1, limit=4
    $region2: #{feed_forward_network.1} parent=1 // loop_pre_header
      _
    $region3: #{feed_forward_network.1} parent=1 // loop_header
      %s14 = sphi 0, %s18
      %p15 = scmp.ge.s32.totalorder %s14, 4
      %s21 = sphi 0, %s33
      %s22 = sphi 0, %s29
      %s23 = sphi 0, %s21
      %s24 = sphi 0, %s22
      %s25 = sphi 0, %s23
      %s26 = sphi 0, %s24
      %s36 = sphi 0, %s38
      %s39 = sphi 0, %s36
      %s40 = sphi 0, %s39
      %s56 = sphi 0, %s40
      %s62 = sphi 0, %s64
      %s65 = sphi 0, %s62
      %s66 = sphi 0, %s65
      %s82 = sphi 0, %s66
      %s86 = sphi 0, %s86
      %s88 = sphi 0, %s86
      %s89 = sphi 0, %s88
      %s103 = sphi 0, %s89
      %s109 = sphi 0, %s111
      %s112 = sphi 0, %s109
      %s113 = sphi 0, %s112
      %s129 = sphi 0, %s113
      %s133 = sphi 0, %s133
      %s135 = sphi 0, %s133
      %s136 = sphi 0, %s135
      %s150 = sphi 0, %s136
      %s156 = sphi 0, %s158
      %s159 = sphi 0, %s156
      %s160 = sphi 0, %s159
      %s176 = sphi 0, %s160
    $region4: #{feed_forward_network.1} parent=1 // loop_header_branch
      %17 = sbr.rel (%p15) target = $region8
    $region5: #{feed_forward_network.1} parent=1 // loop_body
      %s19 = ssub.s32 %s14, 1
      %s20 = ssub.s32 %s14, 2
      %s27 = sadd.s32 1, %s22
      %p28 = scmp.ge.s32.totalorder %s27, 1
      %s29 = scalar_select %p28, 0, %s27
      %s30 = sadd.s32 1, %s21
      %s31 = scalar_select %p28, %s30, %s21
      %p32 = scmp.ge.s32.totalorder %s31, 2
      %s33 = scalar_select %p32, 0, %s31
      %s34 = ssub.s32 %s21, %s33
      %p35 = scmp.eq.s32.totalorder %s34, 0
      %s37 = sadd.s32 %s36, 1
      %s38 = scalar_select %p35, %s36, %s37
      %p41 = pneg %p35
      %p42 = scmp.eq.s32.totalorder %s14, 1
      %p43 = por %p41, %p42
      %p44 = scmp.ne.s32.totalorder %s36, %s39
      %p45 = scmp.eq.s32.totalorder %s14, 0
      %p46 = por %p44, %p45
      %p47 = scmp.ne.s32.totalorder %s36, %s39
      %p48 = scmp.eq.s32.totalorder %s19, 1
      %p49 = por %p47, %p48
      %p50 = scmp.ne.s32.totalorder %s39, %s40
      %p51 = scmp.eq.s32.totalorder %s19, 0
      %p52 = por %p50, %p51
      %p53 = scmp.ne.s32.totalorder %s39, %s40
      %p54 = scmp.eq.s32.totalorder %s20, 1
      %p55 = por %p53, %p54
      %p57 = scmp.ne.s32.totalorder %s40, %s56
      %p58 = scmp.eq.s32.totalorder %s20, 0
      %p59 = por %p57, %p58
      %s60 = ssub.s32 %s22, %s29
      %p61 = scmp.eq.s32.totalorder %s60, 0
      %s63 = sadd.s32 %s62, 1
      %s64 = scalar_select %p61, %s62, %s63
      %p67 = pneg %p61
      %p68 = scmp.eq.s32.totalorder %s14, 1
      %p69 = por %p67, %p68
      %p70 = scmp.ne.s32.totalorder %s62, %s65
      %p71 = scmp.eq.s32.totalorder %s14, 0
      %p72 = por %p70, %p71
      %p73 = scmp.ne.s32.totalorder %s62, %s65
      %p74 = scmp.eq.s32.totalorder %s19, 1
      %p75 = por %p73, %p74
      %p76 = scmp.ne.s32.totalorder %s65, %s66
      %p77 = scmp.eq.s32.totalorder %s19, 0
      %p78 = por %p76, %p77
      %p79 = scmp.ne.s32.totalorder %s65, %s66
      %p80 = scmp.eq.s32.totalorder %s20, 1
      %p81 = por %p79, %p80
      %p83 = scmp.ne.s32.totalorder %s66, %s82
      %p84 = scmp.eq.s32.totalorder %s20, 0
      %p85 = por %p83, %p84
      %s87 = sadd.s32 %s86, 1
      %p90 = scmp.eq.s32.totalorder %s14, 1
      %p91 = scmp.ne.s32.totalorder %s86, %s88
      %p92 = scmp.eq.s32.totalorder %s14, 0
      %p93 = por %p91, %p92
      %p94 = scmp.ne.s32.totalorder %s86, %s88
      %p95 = scmp.eq.s32.totalorder %s19, 1
      %p96 = por %p94, %p95
      %p97 = scmp.ne.s32.totalorder %s88, %s89
      %p98 = scmp.eq.s32.totalorder %s19, 0
      %p99 = por %p97, %p98
      %p100 = scmp.ne.s32.totalorder %s88, %s89
      %p101 = scmp.eq.s32.totalorder %s20, 1
      %p102 = por %p100, %p101
      %p104 = scmp.ne.s32.totalorder %s89, %s103
      %p105 = scmp.eq.s32.totalorder %s20, 0
      %p106 = por %p104, %p105
      %s107 = ssub.s32 %s22, %s29
      %p108 = scmp.eq.s32.totalorder %s107, 0
      %s110 = sadd.s32 %s109, 1
      %s111 = scalar_select %p108, %s109, %s110
      %p114 = pneg %p108
      %p115 = scmp.eq.s32.totalorder %s14, 1
      %p116 = por %p114, %p115
      %p117 = scmp.ne.s32.totalorder %s109, %s112
      %p118 = scmp.eq.s32.totalorder %s14, 0
      %p119 = por %p117, %p118
      %p120 = scmp.ne.s32.totalorder %s109, %s112
      %p121 = scmp.eq.s32.totalorder %s19, 1
      %p122 = por %p120, %p121
      %p123 = scmp.ne.s32.totalorder %s112, %s113
      %p124 = scmp.eq.s32.totalorder %s19, 0
      %p125 = por %p123, %p124
      %p126 = scmp.ne.s32.totalorder %s112, %s113
      %p127 = scmp.eq.s32.totalorder %s20, 1
      %p128 = por %p126, %p127
      %p130 = scmp.ne.s32.totalorder %s113, %s129
      %p131 = scmp.eq.s32.totalorder %s20, 0
      %p132 = por %p130, %p131
      %s134 = sadd.s32 %s133, 1
      %p137 = scmp.eq.s32.totalorder %s14, 1
      %p138 = scmp.ne.s32.totalorder %s133, %s135
      %p139 = scmp.eq.s32.totalorder %s14, 0
      %p140 = por %p138, %p139
      %p141 = scmp.ne.s32.totalorder %s133, %s135
      %p142 = scmp.eq.s32.totalorder %s19, 1
      %p143 = por %p141, %p142
      %p144 = scmp.ne.s32.totalorder %s135, %s136
      %p145 = scmp.eq.s32.totalorder %s19, 0
      %p146 = por %p144, %p145
      %p147 = scmp.ne.s32.totalorder %s135, %s136
      %p148 = scmp.eq.s32.totalorder %s20, 1
      %p149 = por %p147, %p148
      %p151 = scmp.ne.s32.totalorder %s136, %s150
      %p152 = scmp.eq.s32.totalorder %s20, 0
      %p153 = por %p151, %p152
      %s154 = ssub.s32 %s21, %s33
      %p155 = scmp.eq.s32.totalorder %s154, 0
      %s157 = sadd.s32 %s156, 1
      %s158 = scalar_select %p155, %s156, %s157
      %p161 = pneg %p155
      %p162 = scmp.eq.s32.totalorder %s14, 1
      %p163 = por %p161, %p162
      %p164 = scmp.ne.s32.totalorder %s156, %s159
      %p165 = scmp.eq.s32.totalorder %s14, 0
      %p166 = por %p164, %p165
      %p167 = scmp.ne.s32.totalorder %s156, %s159
      %p168 = scmp.eq.s32.totalorder %s19, 1
      %p169 = por %p167, %p168
      %p170 = scmp.ne.s32.totalorder %s159, %s160
      %p171 = scmp.eq.s32.totalorder %s19, 0
      %p172 = por %p170, %p171
      %p173 = scmp.ne.s32.totalorder %s159, %s160
      %p174 = scmp.eq.s32.totalorder %s20, 1
      %p175 = por %p173, %p174
      %p177 = scmp.ne.s32.totalorder %s160, %s176
      %p178 = scmp.eq.s32.totalorder %s20, 0
      %p179 = por %p177, %p178
      %p180 = scmp.le.s32.totalorder 1, %s14
      %p181 = scmp.lt.s32.totalorder %s14, 3
      %p182 = pnand %p180, %p181
      %p183 = pneg %p182
      // Predicated region
      $region9: #{feed_forward_network.1} parent=5 // pred_check
        _
      $region10: #{feed_forward_network.1} parent=5 // pred_check_branch
        %185 = sbr.rel (%p182) target = $region12
      $region11: #{feed_forward_network.1} parent=5 // pred_region
        %s186 = ssub.s32 %s14, 1
        // Predicated region
        $region13: #{feed_forward_network.1} parent=11 // pred_check
          %p187 = pneg %p78
        $region14: #{feed_forward_network.1} parent=11 // pred_check_branch
          %189 = sbr.rel (%p187) target = $region16
        $region15: #{feed_forward_network.1} parent=11 // pred_region
          %p190 = scmp.lt.s32.totalorder %s24, 0
          %s191 = scalar_select %p190, %s24, 0
          %s192 = smul.addr %s191, 8
          %s193 = scalar_lea.vmem %s1, %s192
        $region16: #{feed_forward_network.1} parent=11 // pred_fallthru
          _
        // Predicated region
        $region17: #{feed_forward_network.1} parent=11 // pred_check
          %p194 = pneg %p99
        $region18: #{feed_forward_network.1} parent=11 // pred_check_branch
          %196 = sbr.rel (%p194) target = $region20
        $region19: #{feed_forward_network.1} parent=11 // pred_region
          _
        $region20: #{feed_forward_network.1} parent=11 // pred_fallthru
          _
        // Predicated region
        $region21: #{feed_forward_network.1} parent=11 // pred_check
          %p197 = pneg %p125
        $region22: #{feed_forward_network.1} parent=11 // pred_check_branch
          %199 = sbr.rel (%p197) target = $region24
        $region23: #{feed_forward_network.1} parent=11 // pred_region
          %s200 = smul.u32 8, %s24
          %p201 = scmp.lt.s32.totalorder %s200, 7
          %s202 = scalar_select %p201, %s200, 7
          %s203 = smul.addr %s202, 8
          %s204 = scalar_lea.vmem %s3, %s203
          %s205 = smul.u32 8, %s24
        $region24: #{feed_forward_network.1} parent=11 // pred_fallthru
          _
        // Predicated region
        $region25: #{feed_forward_network.1} parent=11 // pred_check
          %p206 = pneg %p146
        $region26: #{feed_forward_network.1} parent=11 // pred_check_branch
          %208 = sbr.rel (%p206) target = $region28
        $region27: #{feed_forward_network.1} parent=11 // pred_region
          _
        $region28: #{feed_forward_network.1} parent=11 // pred_fallthru
          _
      $region12: #{feed_forward_network.1} parent=5 // pred_fallthru
        _
      %p209 = scmp.lt.s32.totalorder %s14, 2
      // Predicated region
      $region29: #{feed_forward_network.1} parent=5 // pred_check
        %p210 = pneg %p209
      $region30: #{feed_forward_network.1} parent=5 // pred_check_branch
        %212 = sbr.rel (%p210) target = $region32
      $region31: #{feed_forward_network.1} parent=5 // pred_region
        // Predicated region
        $region33: #{feed_forward_network.1} parent=31 // pred_check
          %p213 = pneg %p46
        $region34: #{feed_forward_network.1} parent=31 // pred_check_branch
          %215 = sbr.rel (%p213) target = $region36
        $region35: #{feed_forward_network.1} parent=31 // pred_region
          %p216 = scmp.lt.s32.totalorder %s21, 1
          %s217 = scalar_select %p216, %s21, 1
          %s218 = smul.addr %s217, 8
          %s219 = scalar_lea.vmem %s0, %s218
        $region36: #{feed_forward_network.1} parent=31 // pred_fallthru
          _
      $region32: #{feed_forward_network.1} parent=5 // pred_fallthru
        _
      %p220 = scmp.le.s32.totalorder 1, %s14
      %p221 = scmp.lt.s32.totalorder %s14, 3
      %p222 = pnand %p220, %p221
      %p223 = pneg %p222
      // Predicated region
      $region37: #{feed_forward_network.1} parent=5 // pred_check
        _
      $region38: #{feed_forward_network.1} parent=5 // pred_check_branch
        %225 = sbr.rel (%p222) target = $region40
      $region39: #{feed_forward_network.1} parent=5 // pred_region
        %s226 = ssub.s32 %s14, 1
        %p227 = scmp.lt.s32.totalorder %s23, 1
        %s228 = scalar_select %p227, %s23, 1
        %s229 = smul.addr %s228, 8
        %s230 = scalar_lea.vmem %s0, %s229
        %p231 = pneg %p52
        %p232 = pneg %p49
        %p233 = scmp.lt.s32.totalorder %s24, 0
        %s234 = scalar_select %p233, %s24, 0
        %s235 = smul.addr %s234, 8
        %s236 = scalar_lea.vmem %s1, %s235
        %p237 = pneg %p78
        %p238 = pneg %p75
        %p239 = pneg %p99
        %p240 = pneg %p96
        %s241 = smul.u32 8, %s24
        %p242 = scmp.lt.s32.totalorder %s241, 7
        %s243 = scalar_select %p242, %s241, 7
        %s244 = smul.addr %s243, 8
        %s245 = scalar_lea.vmem %s3, %s244
        %p246 = pneg %p125
        %p247 = pneg %p122
        %p248 = pneg %p146
        %p249 = pneg %p143
        %p250 = pneg %p172
        %p251 = pneg %p169
        %s252 = sand.u32 %s159, 1
        %s253 = scalar_lea.sflag [#allocation4], %s252
        %s254 = sand.u32 %s159, 1
        %s255 = smul.addr %s254, 8
        %s256 = scalar_lea.vmem [#allocation3], %s255
        %p257 = scmp.lt.s32.totalorder %s23, 1
        %s258 = scalar_select %p257, %s23, 1
        %s259 = smul.addr %s258, 8
        %s260 = scalar_lea.vmem %s0, %s259
        %p261 = scmp.lt.s32.totalorder %s24, 0
        %s262 = scalar_select %p261, %s24, 0
        %s263 = smul.addr %s262, 8
        %s264 = scalar_lea.vmem %s1, %s263
        %s265 = smul.u32 8, %s24
        %p266 = scmp.lt.s32.totalorder %s265, 7
        %s267 = scalar_select %p266, %s265, 7
        %s268 = smul.addr %s267, 8
        %s269 = scalar_lea.vmem %s3, %s268
        %s270 = smul.u32 8, %s24
        %p271 = scmp.eq.s32.totalorder %s24, 0
        // Predicated region
        $region41: #{feed_forward_network.1} parent=39 // pred_check
          %p272 = pneg %p271
        $region42: #{feed_forward_network.1} parent=39 // pred_check_branch
          %274 = sbr.rel (%p272) target = $region44
        $region43: #{feed_forward_network.1} parent=39 // pred_region
          %vm275 = vcmask 261120
          %276 = vst.msk [vmem:[#allocation2] sm:$0xff] %vm275, 0.0
        $region44: #{feed_forward_network.1} parent=39 // pred_fallthru
          _
        %v277 = vld [vmem:[%s2] sm:$0x1]
        %v278 = vld [vmem:[%s260] sm:$0xff]
        %v279 = vld [vmem:[%s264] sm:$0xff]
        %v280 = vld [vmem:[%s264 + $0x8] sm:$0xff]
        %v281 = vld [vmem:[%s264 + $0x10] sm:$0xff]
        %v282 = vld [vmem:[%s264 + $0x18] sm:$0xff]
        %v284 = vlaneseq
        %v285 = vshrl.u32 %v284, 7
        %v286 = vsub.s32 0, %v285
        %v287 = vrot.slane %v277, %v286
        %vm289 = vcmask 261120
        %v291 = vsel %vm289, %v278, 0
        %293 = vmatprep.subr.mxu0 0.0
        %294 = vmatpush1.msra.mxu0 0.0
        %295 = vmatprep.subr.mxu0 0.0
        %296 = vmatpush1.msra.mxu0 0.0
        %297 = vmatprep.subr.mxu0 0.0
        %298 = vmatpush1.msra.mxu0 0.0
        %299 = vmatprep.subr.mxu0 0.0
        %300 = vmatpush1.msra.mxu0 0.0
        %301 = vmatprep.subr.mxu0 0.0
        %302 = vmatpush1.msra.mxu0 0.0
        %303 = vmatprep.subr.mxu0 0.0
        %304 = vmatpush1.msra.mxu0 0.0
        %305 = vmatprep.subr.mxu0 0.0
        %306 = vmatpush1.msra.mxu0 0.0
        %307 = vmatprep.subr.mxu0 0.0
        %308 = vmatpush1.msra.mxu0 0.0
        %309 = vmatprep.subr.mxu0 0.0
        %310 = vmatpush1.msra.mxu0 0.0
        %311 = vmatprep.subr.mxu0 0.0
        %312 = vmatpush1.msra.mxu0 0.0
        %313 = vmatprep.subr.mxu0 0.0
        %314 = vmatpush1.msra.mxu0 0.0
        %315 = vmatprep.subr.mxu0 0.0
        %316 = vmatpush1.msra.mxu0 0.0
        %317 = vmatprep.subr.mxu0 0.0
        %318 = vmatpush1.msra.mxu0 %v282
        %319 = vmatprep.subr.mxu0 0.0
        %320 = vmatpush1.msra.mxu0 %v281
        %321 = vmatprep.subr.mxu0 0.0
        %322 = vmatpush1.msra.mxu0 %v280
        %323 = vmatprep.subr.mxu0 0.0
        %324 = vmatpush1.msra.mxu0 %v279
        %325 = vmatprep.subr.mxu0 0.0
        %326 = vmatpush2.msra.mxu0 0.0
        %327 = vmatprep.subr.mxu0 0.0
        %328 = vmatpush2.msra.mxu0 0.0
        %329 = vmatprep.subr.mxu0 0.0
        %330 = vmatpush2.msra.mxu0 0.0
        %331 = vmatprep.subr.mxu0 0.0
        %332 = vmatpush2.msra.mxu0 0.0
        %333 = vmatprep.subr.mxu0 0.0
        %334 = vmatpush2.msra.mxu0 0.0
        %335 = vmatprep.subr.mxu0 0.0
        %336 = vmatpush2.msra.mxu0 0.0
        %337 = vmatprep.subr.mxu0 0.0
        %338 = vmatpush2.msra.mxu0 0.0
        %339 = vmatprep.subr.mxu0 0.0
        %340 = vmatpush2.msra.mxu0 0.0
        %341 = vmatprep.subr.mxu0 0.0
        %342 = vmatpush2.msra.mxu0 0.0
        %343 = vmatprep.subr.mxu0 0.0
        %344 = vmatpush2.msra.mxu0 0.0
        %345 = vmatprep.subr.mxu0 0.0
        %346 = vmatpush2.msra.mxu0 0.0
        %347 = vmatprep.subr.mxu0 0.0
        %348 = vmatpush2.msra.mxu0 0.0
        %349 = vmatprep.subr.mxu0 0.0
        %350 = vmatpush2.msra.mxu0 0.0
        %351 = vmatprep.subr.mxu0 0.0
        %352 = vmatpush2.msra.mxu0 0.0
        %353 = vmatprep.subr.mxu0 0.0
        %354 = vmatpush2.msra.mxu0 0.0
        %355 = vmatprep.subr.mxu0 0.0
        %356 = vmatpush2.msra.mxu0 0.0
        %357 = vmatprep.mubr.f32.mxu0 0.0
        %358 = vmatmul.mubr.f32.gmra.mxu0 %v291
        %v359 = vpop.f32.mrf.mxu0
        %v360 = vadd.f32 %v287, %v359
        %v361 = vpop.f32.mrf.mxu0
        %362 = vdwg.mxu0
        %v363 = vmax.f32 %v360, 0.0
        %v364 = vld [vmem:[#allocation2] sm:$0xff]
        %v365 = vld [vmem:[%s269] sm:$0xff]
        %v366 = vld [vmem:[%s269 + $0x8] sm:$0xff]
        %v367 = vld [vmem:[%s269 + $0x10] sm:$0xff]
        %v368 = vld [vmem:[%s269 + $0x18] sm:$0xff]
        %v369 = vld [vmem:[%s269 + $0x20] sm:$0xff]
        %v370 = vld [vmem:[%s269 + $0x28] sm:$0xff]
        %v371 = vld [vmem:[%s269 + $0x30] sm:$0xff]
        %v372 = vld [vmem:[%s269 + $0x38] sm:$0xff]
        %vm373 = vcmask 523264
        %v375 = vsel %vm373, %v363, 0
        %377 = vmatprep.subr.mxu0 0.0
        %378 = vmatpush1.msra.mxu0 0.0
        %379 = vmatprep.subr.mxu0 0.0
        %380 = vmatpush1.msra.mxu0 0.0
        %381 = vmatprep.subr.mxu0 0.0
        %382 = vmatpush1.msra.mxu0 0.0
        %383 = vmatprep.subr.mxu0 0.0
        %384 = vmatpush1.msra.mxu0 0.0
        %385 = vmatprep.subr.mxu0 0.0
        %386 = vmatpush1.msra.mxu0 0.0
        %387 = vmatprep.subr.mxu0 0.0
        %388 = vmatpush1.msra.mxu0 0.0
        %389 = vmatprep.subr.mxu0 0.0
        %390 = vmatpush1.msra.mxu0 0.0
        %391 = vmatprep.subr.mxu0 0.0
        %392 = vmatpush1.msra.mxu0 0.0
        %393 = vmatprep.subr.mxu0 0.0
        %394 = vmatpush1.msra.mxu0 %v372
        %395 = vmatprep.subr.mxu0 0.0
        %396 = vmatpush1.msra.mxu0 %v371
        %397 = vmatprep.subr.mxu0 0.0
        %398 = vmatpush1.msra.mxu0 %v370
        %399 = vmatprep.subr.mxu0 0.0
        %400 = vmatpush1.msra.mxu0 %v369
        %401 = vmatprep.subr.mxu0 0.0
        %402 = vmatpush1.msra.mxu0 %v368
        %403 = vmatprep.subr.mxu0 0.0
        %404 = vmatpush1.msra.mxu0 %v367
        %405 = vmatprep.subr.mxu0 0.0
        %406 = vmatpush1.msra.mxu0 %v366
        %407 = vmatprep.subr.mxu0 0.0
        %408 = vmatpush1.msra.mxu0 %v365
        %409 = vmatprep.subr.mxu0 0.0
        %410 = vmatpush2.msra.mxu0 0.0
        %411 = vmatprep.subr.mxu0 0.0
        %412 = vmatpush2.msra.mxu0 0.0
        %413 = vmatprep.subr.mxu0 0.0
        %414 = vmatpush2.msra.mxu0 0.0
        %415 = vmatprep.subr.mxu0 0.0
        %416 = vmatpush2.msra.mxu0 0.0
        %417 = vmatprep.subr.mxu0 0.0
        %418 = vmatpush2.msra.mxu0 0.0
        %419 = vmatprep.subr.mxu0 0.0
        %420 = vmatpush2.msra.mxu0 0.0
        %421 = vmatprep.subr.mxu0 0.0
        %422 = vmatpush2.msra.mxu0 0.0
        %423 = vmatprep.subr.mxu0 0.0
        %424 = vmatpush2.msra.mxu0 0.0
        %425 = vmatprep.subr.mxu0 0.0
        %426 = vmatpush2.msra.mxu0 0.0
        %427 = vmatprep.subr.mxu0 0.0
        %428 = vmatpush2.msra.mxu0 0.0
        %429 = vmatprep.subr.mxu0 0.0
        %430 = vmatpush2.msra.mxu0 0.0
        %431 = vmatprep.subr.mxu0 0.0
        %432 = vmatpush2.msra.mxu0 0.0
        %433 = vmatprep.subr.mxu0 0.0
        %434 = vmatpush2.msra.mxu0 0.0
        %435 = vmatprep.subr.mxu0 0.0
        %436 = vmatpush2.msra.mxu0 0.0
        %437 = vmatprep.subr.mxu0 0.0
        %438 = vmatpush2.msra.mxu0 0.0
        %439 = vmatprep.subr.mxu0 0.0
        %440 = vmatpush2.msra.mxu0 0.0
        %441 = vmatprep.mubr.f32.mxu0 0.0
        %442 = vmatmul.mubr.f32.gmra.mxu0 %v375
        %v443 = vpop.f32.mrf.mxu0
        %v444 = vadd.f32 0.0, %v443
        %v445 = vpop.f32.mrf.mxu0
        %446 = vdwg.mxu0
        %v447 = vadd.f32 %v364, %v444
        %448 = vst.msk [vmem:[#allocation2] sm:$0xff] %vm289, %v447
        // Predicated region
        $region45: #{feed_forward_network.1} parent=39 // pred_check
          %p449 = pneg %p271
        $region46: #{feed_forward_network.1} parent=39 // pred_check_branch
          %451 = sbr.rel (%p449) target = $region48
        $region47: #{feed_forward_network.1} parent=39 // pred_region
          %v452 = vld [vmem:[#allocation2] sm:$0xff]
          %v453 = vld [vmem:[%s4] sm:$0x1]
          %v455 = vlaneseq
          %v456 = vshrl.u32 %v455, 7
          %v457 = vsub.s32 0, %v456
          %v458 = vrot.slane %v453, %v457
          %v460 = vadd.f32 %v452, %v458
          %461 = vst.msk [vmem:[%s256] sm:$0xff] %vm289, %v460
        $region48: #{feed_forward_network.1} parent=39 // pred_fallthru
          _
        %s462 = sand.u32 %s159, 1
        %s463 = scalar_lea.sflag [#allocation4], %s462
        %s464 = sand.u32 %s159, 1
        %s465 = smul.addr %s464, 8
        %s466 = scalar_lea.vmem [#allocation3], %s465
        // Predicated region
        $region49: #{feed_forward_network.1} parent=39 // pred_check
          %p467 = pneg %p169
        $region50: #{feed_forward_network.1} parent=39 // pred_check_branch
          %469 = sbr.rel (%p467) target = $region52
        $region51: #{feed_forward_network.1} parent=39 // pred_region
          %s471 = ssub.s32 128, 128
          %472 = vsyncadd %s463, %s471
          %s473 = smul.addr %s23, 128
          %s474 = scalar_lea.hbm %s5, %s473
          %s476 = sshll.u32 %s466, 4
          %s477 = int_to_ptr.vmem [resolvable:$true] %s476
          %479 = dma.vmem_to_hbm [thread:$0]  %s477, 128, %s474, %s463
        $region52: #{feed_forward_network.1} parent=39 // pred_fallthru
          _
      $region40: #{feed_forward_network.1} parent=5 // pred_fallthru
        _
      %p480 = scmp.le.s32.totalorder 2, %s14
      // Predicated region
      $region53: #{feed_forward_network.1} parent=5 // pred_check
        %p481 = pneg %p480
      $region54: #{feed_forward_network.1} parent=5 // pred_check_branch
        %483 = sbr.rel (%p481) target = $region56
      $region55: #{feed_forward_network.1} parent=5 // pred_region
        %s484 = ssub.s32 %s14, 2
        // Predicated region
        $region57: #{feed_forward_network.1} parent=55 // pred_check
          %p485 = pneg %p175
        $region58: #{feed_forward_network.1} parent=55 // pred_check_branch
          %487 = sbr.rel (%p485) target = $region60
        $region59: #{feed_forward_network.1} parent=55 // pred_region
          %s488 = sand.u32 %s160, 1
          %s489 = scalar_lea.sflag [#allocation4], %s488
          %s490 = sand.u32 %s160, 1
          %s491 = smul.addr %s490, 8
          %s492 = scalar_lea.vmem [#allocation3], %s491
          %493 = dma.done %s489, 128
        $region60: #{feed_forward_network.1} parent=55 // pred_fallthru
          _
      $region56: #{feed_forward_network.1} parent=5 // pred_fallthru
        _
    $region6: #{feed_forward_network.1} parent=1 // loop_footer
      %s18 = sadd.s32 1, %s14
    $region7: #{feed_forward_network.1} parent=1 // loop_footer_branch
      %13 = sbr.rel target = $region3
    $region8: #{feed_forward_network.1} parent=1 // loop_exit
      _
    %494 = vsyncpa [#allocation4], 1
    %s495 = scalar_lea.sflag [#allocation4], 1
    %496 = vsyncpa %s495, 1

</llo_original>
